<compile_context>
chip_gen: v7x
topology: tpu7x:2x2x1
jax: 0.10.0
libtpu: 0.0.40
codegen_flags: <defaults>
</compile_context>

<pallas_src>
import numpy as np
from functools import partial

import jax
import jax.numpy as jnp
from jax import lax
from jax.experimental import pallas as pl
from jax.experimental.pallas import tpu as pltpu


# ---------------------------------------------------------------------------
# helpers
# ---------------------------------------------------------------------------

def _project(w_ref, xn, mxu_dtype):
    """1x1x1 Conv3d (no bias) == matmul over channels.

    Tiny channel counts use VPU broadcast-FMAs (contraction depth << MXU);
    everything else goes to the MXU with (optionally bf16) operands and f32
    accumulation.  Threshold lowered to 16 per perf review."""
    c = xn.shape[0]
    if c <= 16:
        w = w_ref[...].astype(jnp.float32)
        out = w[:, 0:1] * xn[0:1, :]
        for ci in range(1, c):
            out = out + w[:, ci:ci + 1] * xn[ci:ci + 1, :]
        return out
    return lax.dot_general(
        w_ref[...].astype(mxu_dtype), xn.astype(mxu_dtype),
        (((1,), (0,)), ((), ())), preferred_element_type=jnp.float32)


def _vmem_limit_bytes():
    """Per-generation VMEM budget: ~3/4 of physical, capped at 100 MiB.

    -> ~48 MiB on v7x (64 MiB physical), ~96-100 MiB on v5e/v6e (128 MiB)."""
    cap = 64 * 1024 * 1024
    try:
        cap = int(pltpu.get_tpu_info().vmem_capacity_bytes)
    except Exception:
        pass
    return min(int(cap * 3 // 4), 100 * 1024 * 1024)


# ---------------------------------------------------------------------------
# K1: pre-norm (PreNorm's GroupNorm(1, C)) statistics over N tiles
# ---------------------------------------------------------------------------

def gn_stats_kernel(x_ref, o_ref, acc, *, inv_count, eps):
    # Padded spatial columns are zero, so they do not perturb sum / sum-sq.
    j = pl.program_id(1)

    @pl.when(j == 0)
    def _():
        acc[0] = 0.0
        acc[1] = 0.0

    x = x_ref[0].astype(jnp.float32)
    acc[0] += jnp.sum(x)
    acc[1] += jnp.sum(x * x)

    @pl.when(j == pl.num_programs(1) - 1)
    def _():
        mean = acc[0] * inv_count
        var = acc[1] * inv_count - mean * mean
        rstd = lax.rsqrt(var + eps)
        o_ref[0, 0:1, :] = jnp.full((1, 128), mean, jnp.float32)
        o_ref[0, 1:2, :] = jnp.full((1, 128), rstd, jnp.float32)


# ---------------------------------------------------------------------------
# K2: online k-softmax over N + (heads, Dh, Dh) context accumulation
# ---------------------------------------------------------------------------

def context_kernel(x_ref, stats_ref, gpre_ref, bpre_ref, wkv_ref, ctx_ref,
                   m_scr, l_scr, ctx_scr, *,
                   heads, dim_head, scale, n_valid, tile_n,
                   mxu_dtype, approx_recip):
    f32 = jnp.float32
    i = pl.program_id(0)
    j = pl.program_id(1)
    hidden = heads * dim_head

    @pl.when(j == 0)
    def _():
        m_scr[...] = jnp.full(m_scr.shape, -jnp.inf, f32)
        l_scr[...] = jnp.zeros(l_scr.shape, f32)
        ctx_scr[...] = jnp.zeros(ctx_scr.shape, f32)

    # Pre-norm folded into a per-channel affine (stats from K1, SMEM scalars).
    mu = stats_ref[i, 0, 0]
    rstd = stats_ref[i, 1, 0]
    a = gpre_ref[...] * rstd                       # (C, 1)
    sh = bpre_ref[...] - mu * a                    # (C, 1)
    xn = x_ref[0].astype(f32) * a + sh             # (C, T)

    kv = _project(wkv_ref, xn, mxu_dtype)          # (2*hidden, T) f32
    k = kv[:hidden].reshape(heads, dim_head, tile_n)
    v = kv[hidden:].reshape(heads, dim_head, tile_n)

    # Single 0/1 mask multiply handles the padded tail of the last tile
    # (padded columns contribute nothing to l or the context).
    lane = lax.broadcasted_iota(jnp.int32, (1, 1, tile_n), 2)
    maskf = (lane + j * tile_n < n_valid).astype(f32)

    m_new = jnp.maximum(m_scr[...], jnp.max(k, axis=2, keepdims=True))
    alpha = jnp.exp(m_scr[...] - m_new)
    ek = jnp.exp(k - m_new) * maskf
    l_scr[...] = alpha * l_scr[...] + jnp.sum(ek, axis=2, keepdims=True)
    ctx_scr[...] = alpha * ctx_scr[...] + lax.dot_general(
        ek.astype(mxu_dtype), v.astype(mxu_dtype),
        (((2,), (2,)), ((0,), (0,))), preferred_element_type=f32)
    m_scr[...] = m_new

    @pl.when(j == pl.num_programs(1) - 1)
    def _():
        if approx_recip:
            inv_l = pl.reciprocal(l_scr[...], approx=True)
        else:
            inv_l = 1.0 / l_scr[...]
        # Fold the post-softmax q scale into the context.
        ctx_ref[0] = ctx_scr[...] * (inv_l * scale)


# ---------------------------------------------------------------------------
# K3: attention output, 1x1 conv(+bias), output-GroupNorm statistics
# ---------------------------------------------------------------------------

def attn_proj_kernel(x_ref, stats_ref, gpre_ref, bpre_ref, wq_ref, ctx_ref,
                     wout_ref, bout_ref, proj_ref, ostats_ref, acc, *,
                     heads, dim_head, n_valid, tile_n, inv_count, eps,
                     mxu_dtype, approx_recip):
    f32 = jnp.float32
    i = pl.program_id(0)
    j = pl.program_id(1)
    hidden = heads * dim_head

    @pl.when(j == 0)
    def _():
        acc[0] = 0.0
        acc[1] = 0.0

    mu = stats_ref[i, 0, 0]
    rstd = stats_ref[i, 1, 0]
    a = gpre_ref[...] * rstd
    sh = bpre_ref[...] - mu * a
    xn = x_ref[0].astype(f32) * a + sh

    q = _project(wq_ref, xn, mxu_dtype).reshape(heads, dim_head, tile_n)
    q = q - jnp.max(q, axis=1, keepdims=True)        # softmax over head dim
    eq = jnp.exp(q)
    sq = jnp.sum(eq, axis=1, keepdims=True)          # (heads, 1, T)
    if approx_recip:
        qsm = eq * pl.reciprocal(sq, approx=True)
    else:
        qsm = eq / sq

    ctx = ctx_ref[0]                                 # (heads, Dh, Dh) *scale/l
    # attn[h, e, t] = sum_d ctx[h, d, e] * qsm[h, d, t]   (transpose-free)
    attn = lax.dot_general(
        ctx.astype(mxu_dtype), qsm.astype(mxu_dtype),
        (((1,), (1,)), ((0,), (0,))), preferred_element_type=f32)
    attn = attn.reshape(hidden, tile_n)

    # to_out[0]: 1x1x1 Conv3d with bias
    proj = lax.dot_general(
        wout_ref[...].astype(mxu_dtype), attn.astype(mxu_dtype),
        (((1,), (0,)), ((), ())), preferred_element_type=f32) + bout_ref[...]

    # Output-GroupNorm statistics from masked sum / sum-of-squares.
    lane = lax.broadcasted_iota(jnp.int32, (1, tile_n), 1)
    maskf = (lane + j * tile_n < n_valid).astype(f32)
    pm = proj * maskf
    acc[0] += jnp.sum(pm)
    acc[1] += jnp.sum(pm * proj)

    proj_ref[0] = proj

    @pl.when(j == pl.num_programs(1) - 1)
    def _():
        mean = acc[0] * inv_count
        var = acc[1] * inv_count - mean * mean
        orstd = lax.rsqrt(var + eps)
        ostats_ref[0, 0:1, :] = jnp.full((1, 128), mean, f32)
        ostats_ref[0, 1:2, :] = jnp.full((1, 128), orstd, f32)


# ---------------------------------------------------------------------------
# K4: to_out[1] GroupNorm(1, C) normalize + affine (pure elementwise)
# ---------------------------------------------------------------------------

def out_norm_kernel(p_ref, stats_ref, g_ref, b_ref, o_ref):
    i = pl.program_id(0)
    mean = stats_ref[i, 0, 0]
    rstd = stats_ref[i, 1, 0]
    g = g_ref[...] * rstd                            # (C, 1)
    sh = b_ref[...] - mean * g
    o_ref[0] = (p_ref[0] * g + sh).astype(o_ref.dtype)


# ---------------------------------------------------------------------------
# wrapper
# ---------------------------------------------------------------------------

def prenorm_linear_attention(x, gamma_pre, beta_pre, wqkv, wout, bout,
                             gamma_out, beta_out, *, heads=1, dim_head=32,
                             eps=1e-5, tile_n=4096, precise=False):
    """PreNorm(dim, LinearAttention(dim)).forward for NCDHW input x.

    precise=False (default): bf16 MXU operands (f32 accumulation) + approx
    reciprocals -- the performance configuration.
    precise=True : all-f32 matmuls and exact division (tight-tolerance checks).
    """
    b, c, l, h, w = x.shape
    n = l * h * w
    hidden = heads * dim_head
    scale = float(dim_head) ** -0.5

    tile_n = max(128, (tile_n // 128) * 128)
    t = min(tile_n, pl.cdiv(n, 128) * 128)       # lane-dense N tile
    n_pad = pl.cdiv(n, t) * t
    nt = n_pad // t

    x_flat = x.reshape(b, c, n)
    if n_pad != n:
        x_flat = jnp.pad(x_flat, ((0, 0), (0, 0), (0, n_pad - n)))

    f32 = jnp.float32
    mxu_dtype = f32 if precise else jnp.bfloat16
    approx_recip = not precise

    # Pre-cast resident params to their in-kernel compute dtype (perf review).
    qkv_w_dtype = f32 if c <= 16 else mxu_dtype
    wq = wqkv[:hidden].astype(qkv_w_dtype)                  # (hidden, C)
    wkv = wqkv[hidden:].astype(qkv_w_dtype)                 # (2*hidden, C)
    wout_p = wout.astype(mxu_dtype)                         # (C, hidden)
    bout_c1 = bout.reshape(c, 1).astype(f32)
    gpre_c1 = gamma_pre.reshape(c, 1).astype(f32)
    bpre_c1 = beta_pre.reshape(c, 1).astype(f32)
    gout_c1 = gamma_out.reshape(c, 1).astype(f32)
    bout2_c1 = beta_out.reshape(c, 1).astype(f32)

    vlim = _vmem_limit_bytes()
    cp_red = pltpu.CompilerParams(
        dimension_semantics=("parallel", "arbitrary"), vmem_limit_bytes=vlim)
    cp_par = pltpu.CompilerParams(
        dimension_semantics=("parallel", "parallel"), vmem_limit_bytes=vlim)

    inv_count = 1.0 / float(c * n)

    x_spec = pl.BlockSpec((1, c, t), lambda i, j: (i, 0, j))
    smem_spec = pl.BlockSpec(memory_space=pltpu.MemorySpace.SMEM)
    c1_spec = pl.BlockSpec((c, 1), lambda i, j: (0, 0))
    stats_out_spec = pl.BlockSpec((1, 2, 128), lambda i, j: (i, 0, 0))

    # --- K1: pre-norm statistics --------------------------------------------
    stats_pre = pl.pallas_call(
        partial(gn_stats_kernel, inv_count=inv_count, eps=eps),
        out_shape=jax.ShapeDtypeStruct((b, 2, 128), f32),
        grid=(b, nt),
        in_specs=[x_spec],
        out_specs=stats_out_spec,
        scratch_shapes=[pltpu.SMEM((2,), f32)],
        compiler_params=cp_red,
    )(x_flat)

    # --- K2: online k-softmax over N + context -------------------------------
    ctx = pl.pallas_call(
        partial(context_kernel, heads=heads, dim_head=dim_head, scale=scale,
                n_valid=n, tile_n=t, mxu_dtype=mxu_dtype,
                approx_recip=approx_recip),
        out_shape=jax.ShapeDtypeStruct((b, heads, dim_head, dim_head), f32),
        grid=(b, nt),
        in_specs=[x_spec, smem_spec, c1_spec, c1_spec,
                  pl.BlockSpec((2 * hidden, c), lambda i, j: (0, 0))],
        out_specs=pl.BlockSpec((1, heads, dim_head, dim_head),
                               lambda i, j: (i, 0, 0, 0)),
        scratch_shapes=[pltpu.VMEM((heads, dim_head, 1), f32),
                        pltpu.VMEM((heads, dim_head, 1), f32),
                        pltpu.VMEM((heads, dim_head, dim_head), f32)],
        compiler_params=cp_red,
    )(x_flat, stats_pre, gpre_c1, bpre_c1, wkv)

    # --- K3: attn out, 1x1 conv(+bias), output-GroupNorm stats ---------------
    proj, stats_out = pl.pallas_call(
        partial(attn_proj_kernel, heads=heads, dim_head=dim_head, n_valid=n,
                tile_n=t, inv_count=inv_count, eps=eps, mxu_dtype=mxu_dtype,
                approx_recip=approx_recip),
        out_shape=(jax.ShapeDtypeStruct((b, c, n_pad), f32),
                   jax.ShapeDtypeStruct((b, 2, 128), f32)),
        grid=(b, nt),
        in_specs=[x_spec, smem_spec, c1_spec, c1_spec,
                  pl.BlockSpec((hidden, c), lambda i, j: (0, 0)),
                  pl.BlockSpec((1, heads, dim_head, dim_head),
                               lambda i, j: (i, 0, 0, 0)),
                  pl.BlockSpec((c, hidden), lambda i, j: (0, 0)),
                  c1_spec],
        out_specs=(x_spec, stats_out_spec),
        scratch_shapes=[pltpu.SMEM((2,), f32)],
        compiler_params=cp_red,
    )(x_flat, stats_pre, gpre_c1, bpre_c1, wq, ctx, wout_p, bout_c1)

    # --- K4: output GroupNorm normalize + affine -----------------------------
    y_flat = pl.pallas_call(
        out_norm_kernel,
        out_shape=jax.ShapeDtypeStruct((b, c, n_pad), x.dtype),
        grid=(b, nt),
        in_specs=[x_spec, smem_spec, c1_spec, c1_spec],
        out_specs=x_spec,
        compiler_params=cp_par,
    )(proj, stats_out, gout_c1, bout2_c1)

    # TODO(synk): drop this slice+reshape copy if downstream can consume the
    # padded (b, c, n_pad) layout directly.
    return y_flat[:, :, :n].reshape(b, c, l, h, w)


# ---------------------------------------------------------------------------
# pure-JAX reference (matches PreNorm(dim, LinearAttention(dim)).forward)
# ---------------------------------------------------------------------------

def prenorm_linear_attention_ref(x, gamma_pre, beta_pre, wqkv, wout, bout,
                                 gamma_out, beta_out, *, heads=1, dim_head=32,
                                 eps=1e-5):
    b, c, l, h, w = x.shape
    n = l * h * w
    hidden = heads * dim_head
    scale = float(dim_head) ** -0.5
    f32 = jnp.float32

    xf = x.reshape(b, c, n).astype(f32)
    mu = jnp.mean(xf, axis=(1, 2), keepdims=True)
    var = jnp.mean((xf - mu) ** 2, axis=(1, 2), keepdims=True)
    xn = (xf - mu) / jnp.sqrt(var + eps)
    xn = xn * gamma_pre.astype(f32)[None, :, None] \
        + beta_pre.astype(f32)[None, :, None]

    qkv = jnp.einsum('oc,bcn->bon', wqkv.astype(f32), xn)
    q, k, v = jnp.split(qkv, 3, axis=1)
    q = q.reshape(b, heads, dim_head, n)
    k = k.reshape(b, heads, dim_head, n)
    v = v.reshape(b, heads, dim_head, n)
    q = jax.nn.softmax(q, axis=-2) * scale
    k = jax.nn.softmax(k, axis=-1)
    context = jnp.einsum('bhdn,bhen->bhde', k, v)
    out = jnp.einsum('bhde,bhdn->bhen', context, q).reshape(b, hidden, n)

    proj = jnp.einsum('oc,bcn->bon', wout.astype(f32), out)
    proj = proj + bout.astype(f32)[None, :, None]
    pm = jnp.mean(proj, axis=(1, 2), keepdims=True)
    pv = jnp.mean((proj - pm) ** 2, axis=(1, 2), keepdims=True)
    y = (proj - pm) / jnp.sqrt(pv + eps)
    y = y * gamma_out.astype(f32)[None, :, None] \
        + beta_out.astype(f32)[None, :, None]
    return y.reshape(b, c, l, h, w)


if __name__ == "__main__":
    def make_params(key, c, hidden):
        ks = jax.random.split(key, 7)
        gamma_pre = 1.0 + 0.1 * jax.random.normal(ks[0], (c,), jnp.float32)
        beta_pre = 0.1 * jax.random.normal(ks[1], (c,), jnp.float32)
        wqkv = 0.1 * jax.random.normal(ks[2], (3 * hidden, c), jnp.float32)
        wout = 0.1 * jax.random.normal(ks[3], (c, hidden), jnp.float32)
        bout = 0.1 * jax.random.normal(ks[4], (c,), jnp.float32)
        gamma_out = 1.0 + 0.1 * jax.random.normal(ks[5], (c,), jnp.float32)
        beta_out = 0.1 * jax.random.normal(ks[6], (c,), jnp.float32)
        return gamma_pre, beta_pre, wqkv, wout, bout, gamma_out, beta_out

    HEADS, DH = 1, 32
    key = jax.random.PRNGKey(0)
    kx1, kp1, kx2, kp2 = jax.random.split(key, 4)

    # Case 1: dim=4, x (2, 4, 4, 4, 4) -> N=64, a single lane-dense tile.
    x1 = jax.random.normal(kx1, (2, 4, 4, 4, 4), jnp.float32)
    p1 = make_params(kp1, 4, HEADS * DH)
    ref1 = prenorm_linear_attention_ref(x1, *p1, heads=HEADS, dim_head=DH)
    out1_precise = prenorm_linear_attention(x1, *p1, heads=HEADS, dim_head=DH,
                                            precise=True)
    out1_fast = prenorm_linear_attention(x1, *p1, heads=HEADS, dim_head=DH)
    jax.block_until_ready((out1_precise, out1_fast))
    np.testing.assert_allclose(np.asarray(out1_precise), np.asarray(ref1),
                               rtol=2e-5, atol=2e-5)
    np.testing.assert_allclose(np.asarray(out1_fast), np.asarray(ref1),
                               rtol=5e-2, atol=5e-2)

    # Case 2: dim=32, N = 7*6*5 = 210 with tile_n=128 -> 2 N-tiles plus a
    # padded tail: exercises the online k-softmax / context / GroupNorm
    # accumulation across tiles and the MXU QKV path.
    x2 = jax.random.normal(kx2, (1, 32, 7, 6, 5), jnp.float32)
    p2 = make_params(kp2, 32, HEADS * DH)
    ref2 = prenorm_linear_attention_ref(x2, *p2, heads=HEADS, dim_head=DH)
    out2_precise = prenorm_linear_attention(x2, *p2, heads=HEADS, dim_head=DH,
                                            tile_n=128, precise=True)
    out2_fast = prenorm_linear_attention(x2, *p2, heads=HEADS, dim_head=DH,
                                         tile_n=128)
    jax.block_until_ready((out2_precise, out2_fast))
    np.testing.assert_allclose(np.asarray(out2_precise), np.asarray(ref2),
                               rtol=1e-4, atol=1e-4)
    np.testing.assert_allclose(np.asarray(out2_fast), np.asarray(ref2),
                               rtol=5e-2, atol=5e-2)

    print("KERNEL_OK")
</pallas_src>

<mosaic_0001>
module attributes {stable_mosaic.version = 11 : i64} {
  func.func @gn_stats_kernel(%arg0: i32, %arg1: i32, %arg2: memref<1x4x128xf32, #tpu.memory_space<vmem>>, %arg3: memref<1x2x128xf32, #tpu.memory_space<vmem>>, %arg4: memref<2xf32, #tpu.memory_space<smem>>) attributes {dimension_semantics = [#tpu.dimension_semantics<parallel>, #tpu.dimension_semantics<arbitrary>], iteration_bounds = array<i64: 2, 1>, scalar_prefetch = 0 : i64, scratch_operands = 1 : i64, tpu.core_type = #tpu.core_type<tc>, window_params = [{transform_indices = @transform_0, window_bounds = array<i64: 1, 4, 128>}, {transform_indices = @transform_1, window_bounds = array<i64: 1, 2, 128>}]} {
    %c0_i32 = arith.constant 0 : i32
    %0 = arith.cmpi eq, %arg1, %c0_i32 : i32
    %1 = arith.extui %0 : i1 to i32
    %c0_i32_0 = arith.constant 0 : i32
    %2 = arith.cmpi ne, %1, %c0_i32_0 : i32
    scf.if %2 {
      %cst_9 = arith.constant 0.000000e+00 : f32
      %c0_10 = arith.constant 0 : index
      %23 = memref.load %arg4[%c0_10] : memref<2xf32, #tpu.memory_space<smem>>
      memref.store %cst_9, %arg4[%c0_10] : memref<2xf32, #tpu.memory_space<smem>>
      %cst_11 = arith.constant 0.000000e+00 : f32
      %c1_12 = arith.constant 1 : index
      %24 = memref.load %arg4[%c1_12] : memref<2xf32, #tpu.memory_space<smem>>
      memref.store %cst_11, %arg4[%c1_12] : memref<2xf32, #tpu.memory_space<smem>>
    } else {
    }
    %c0 = arith.constant 0 : index
    %c0_1 = arith.constant 0 : index
    %c0_2 = arith.constant 0 : index
    %3 = vector.load %arg2[%c0, %c0_1, %c0_2] : memref<1x4x128xf32, #tpu.memory_space<vmem>>, vector<1x4x128xf32>
    %4 = vector.shape_cast %3 : vector<1x4x128xf32> to vector<4x128xf32>
    %c0_3 = arith.constant 0 : index
    %5 = memref.load %arg4[%c0_3] : memref<2xf32, #tpu.memory_space<smem>>
    %6 = vector.shape_cast %4 : vector<4x128xf32> to vector<1x4x128xf32>
    %cst = arith.constant dense<0.000000e+00> : vector<1xf32>
    %7 = vector.multi_reduction <add>, %6, %cst [1, 2] : vector<1x4x128xf32> to vector<1xf32>
    %8 = vector.shape_cast %7 : vector<1xf32> to vector<1x1x1xf32>
    %9 = vector.extract %8[0, 0, 0] : f32 from vector<1x1x1xf32>
    %10 = arith.addf %5, %9 : f32
    %c0_4 = arith.constant 0 : index
    %11 = memref.load %arg4[%c0_4] : memref<2xf32, #tpu.memory_space<smem>>
    memref.store %10, %arg4[%c0_4] : memref<2xf32, #tpu.memory_space<smem>>
    %c1 = arith.constant 1 : index
    %12 = memref.load %arg4[%c1] : memref<2xf32, #tpu.memory_space<smem>>
    %13 = arith.mulf %4, %4 : vector<4x128xf32>
    %14 = vector.shape_cast %13 : vector<4x128xf32> to vector<1x4x128xf32>
    %cst_5 = arith.constant dense<0.000000e+00> : vector<1xf32>
    %15 = vector.multi_reduction <add>, %14, %cst_5 [1, 2] : vector<1x4x128xf32> to vector<1xf32>
    %16 = vector.shape_cast %15 : vector<1xf32> to vector<1x1x1xf32>
    %17 = vector.extract %16[0, 0, 0] : f32 from vector<1x1x1xf32>
    %18 = arith.addf %12, %17 : f32
    %c1_6 = arith.constant 1 : index
    %19 = memref.load %arg4[%c1_6] : memref<2xf32, #tpu.memory_space<smem>>
    memref.store %18, %arg4[%c1_6] : memref<2xf32, #tpu.memory_space<smem>>
    %c0_i32_7 = arith.constant 0 : i32
    %20 = arith.cmpi eq, %arg1, %c0_i32_7 : i32
    %21 = arith.extui %20 : i1 to i32
    %c0_i32_8 = arith.constant 0 : i32
    %22 = arith.cmpi ne, %21, %c0_i32_8 : i32
    scf.if %22 {
      %c0_9 = arith.constant 0 : index
      %23 = memref.load %arg4[%c0_9] : memref<2xf32, #tpu.memory_space<smem>>
      %cst_10 = arith.constant 3.906250e-03 : f32
      %24 = arith.mulf %23, %cst_10 : f32
      %c1_11 = arith.constant 1 : index
      %25 = memref.load %arg4[%c1_11] : memref<2xf32, #tpu.memory_space<smem>>
      %cst_12 = arith.constant 3.906250e-03 : f32
      %26 = arith.mulf %25, %cst_12 : f32
      %27 = arith.mulf %24, %24 : f32
      %28 = arith.subf %26, %27 : f32
      %cst_13 = arith.constant 9.99999974E-6 : f32
      %29 = arith.addf %28, %cst_13 : f32
      %30 = math.rsqrt %29 : f32
      %31 = vector.broadcast %24 : f32 to vector<1x128xf32>
      %c0_14 = arith.constant 0 : index
      %c0_15 = arith.constant 0 : index
      %c0_16 = arith.constant 0 : index
      %32 = vector.load %arg3[%c0_14, %c0_15, %c0_16] : memref<1x2x128xf32, #tpu.memory_space<vmem>>, vector<1x1x128xf32>
      %33 = vector.shape_cast %32 : vector<1x1x128xf32> to vector<1x128xf32>
      %34 = vector.shape_cast %31 : vector<1x128xf32> to vector<1x1x128xf32>
      tpu.vector_store %arg3[%c0_14, %c0_15, %c0_16], %34 {strides = array<i32>} : memref<1x2x128xf32, #tpu.memory_space<vmem>>, vector<1x1x128xf32>,
      %35 = vector.broadcast %30 : f32 to vector<1x128xf32>
      %c0_17 = arith.constant 0 : index
      %c1_18 = arith.constant 1 : index
      %c0_19 = arith.constant 0 : index
      %36 = vector.load %arg3[%c0_17, %c1_18, %c0_19] : memref<1x2x128xf32, #tpu.memory_space<vmem>>, vector<1x1x128xf32>
      %37 = vector.shape_cast %36 : vector<1x1x128xf32> to vector<1x128xf32>
      %38 = vector.shape_cast %35 : vector<1x128xf32> to vector<1x1x128xf32>
      tpu.vector_store %arg3[%c0_17, %c1_18, %c0_19], %38 {strides = array<i32>} : memref<1x2x128xf32, #tpu.memory_space<vmem>>, vector<1x1x128xf32>,
    } else {
    }
    return
  }
  func.func @transform_0(%arg0: i32, %arg1: i32) -> (i32, i32, i32) {
    %c0_i32 = arith.constant 0 : i32
    %c0_i32_0 = arith.constant 0 : i32
    return %arg0, %c0_i32, %arg1 : i32, i32, i32
  }
  func.func @transform_1(%arg0: i32, %arg1: i32) -> (i32, i32, i32) {
    %c0_i32 = arith.constant 0 : i32
    %c0_i32_0 = arith.constant 0 : i32
    %c0_i32_1 = arith.constant 0 : i32
    return %arg0, %c0_i32, %c0_i32_0 : i32, i32, i32
  }
}

</mosaic_0001>

<llo_original>
// kernel: tpu_custom_call.1
$region0: #{tpu_custom_call.1}
  #allocation0 [shape = 'u32[]', space=smem, size = 0x4, offset = 0x4, fixed_abs, tag = 'smem constant byte address 0x4 - core index']
  #allocation1 [shape = 'u32[144,128]{1,0:T(1,128)}', space=vmem, size = 0x12000, scoped, tag = 'internal scratch']
  #allocation2 [shape = 'f32[2]{0:T(128)}', space=smem, size = 0x200, scoped, tag = 'scratch operand']
  %s0 = inlined_call_operand.hbm [shape: f32[2,4,128], index: 0, kind: input, shape index: {}]
  %s1 = inlined_call_operand.hbm [shape: f32[2,2,128], index: 1, kind: output, shape index: {}]
  %s2 = sld [smem:[#allocation0]]
  $region49: #{tpu_custom_call.1} parent=0
    _
  %s4 = ssub.s32 1, %s2
  %s5 = scalar_select 0, %s4, %s2
  $region1: #{tpu_custom_call.1} parent=0
    #allocation3 [shape = 'u8[4096]{0}', space=vmem, size = 0x1000, scoped, tag = 'input window, operand 0']
    #allocation4 [shape = 's32[2]{0}', space=sflag, size = 0x8, scoped, tag = 'scoped memory for tpu_custom_call.1']
    #allocation5 [shape = 's32[2]{0}', space=sflag, size = 0x8, scoped, tag = 'scoped memory for tpu_custom_call.1']
    #allocation6 [shape = 'u8[2048]{0}', space=vmem, size = 0x800, scoped, tag = 'output window, operand 0']
    %6 = vsyncpa [#allocation4], 0
    %s7 = scalar_lea.sflag [#allocation4], 1
    %8 = vsyncpa %s7, 0
    %9 = vsyncpa [#allocation5], 0
    %s10 = scalar_lea.sflag [#allocation5], 1
    %11 = vsyncpa %s10, 0
    loop: start=0, step=1, limit=4
    $region2: #{tpu_custom_call.1} parent=1 // loop_pre_header
      _
    $region3: #{tpu_custom_call.1} parent=1 // loop_header
      %s13 = sphi 0, %s17
      %p14 = scmp.ge.s32.totalorder %s13, 4
      %s20 = sphi 0, %s32
      %s21 = sphi 0, %s28
      %s22 = sphi 0, %s20
      %s23 = sphi 0, %s21
      %s24 = sphi 0, %s22
      %s25 = sphi 0, %s23
      %s37 = sphi 0, %s39
      %s40 = sphi 0, %s37
      %s41 = sphi 0, %s40
      %s57 = sphi 0, %s41
      %s63 = sphi 0, %s65
      %s66 = sphi 0, %s63
      %s67 = sphi 0, %s66
      %s83 = sphi 0, %s67
    $region4: #{tpu_custom_call.1} parent=1 // loop_header_branch
      %16 = sbr.rel (%p14) target = $region8
    $region5: #{tpu_custom_call.1} parent=1 // loop_body
      %s18 = ssub.s32 %s13, 1
      %s19 = ssub.s32 %s13, 2
      %s26 = sadd.s32 1, %s21
      %p27 = scmp.ge.s32.totalorder %s26, 1
      %s28 = scalar_select %p27, 0, %s26
      %s29 = sadd.s32 1, %s20
      %s30 = scalar_select %p27, %s29, %s20
      %p31 = scmp.ge.s32.totalorder %s30, 2
      %s32 = scalar_select %p31, 0, %s30
      %s33 = ssub.s32 %s20, %s32
      %s34 = ssub.s32 %s21, %s28
      %s35 = sor.u32 %s33, %s34
      %p36 = scmp.eq.s32.totalorder %s35, 0
      %s38 = sadd.s32 %s37, 1
      %s39 = scalar_select %p36, %s37, %s38
      %p42 = pneg %p36
      %p43 = scmp.eq.s32.totalorder %s13, 1
      %p44 = por %p42, %p43
      %p45 = scmp.ne.s32.totalorder %s37, %s40
      %p46 = scmp.eq.s32.totalorder %s13, 0
      %p47 = por %p45, %p46
      %p48 = scmp.ne.s32.totalorder %s37, %s40
      %p49 = scmp.eq.s32.totalorder %s18, 1
      %p50 = por %p48, %p49
      %p51 = scmp.ne.s32.totalorder %s40, %s41
      %p52 = scmp.eq.s32.totalorder %s18, 0
      %p53 = por %p51, %p52
      %p54 = scmp.ne.s32.totalorder %s40, %s41
      %p55 = scmp.eq.s32.totalorder %s19, 1
      %p56 = por %p54, %p55
      %p58 = scmp.ne.s32.totalorder %s41, %s57
      %p59 = scmp.eq.s32.totalorder %s19, 0
      %p60 = por %p58, %p59
      %s61 = ssub.s32 %s20, %s32
      %p62 = scmp.eq.s32.totalorder %s61, 0
      %s64 = sadd.s32 %s63, 1
      %s65 = scalar_select %p62, %s63, %s64
      %p68 = pneg %p62
      %p69 = scmp.eq.s32.totalorder %s13, 1
      %p70 = por %p68, %p69
      %p71 = scmp.ne.s32.totalorder %s63, %s66
      %p72 = scmp.eq.s32.totalorder %s13, 0
      %p73 = por %p71, %p72
      %p74 = scmp.ne.s32.totalorder %s63, %s66
      %p75 = scmp.eq.s32.totalorder %s18, 1
      %p76 = por %p74, %p75
      %p77 = scmp.ne.s32.totalorder %s66, %s67
      %p78 = scmp.eq.s32.totalorder %s18, 0
      %p79 = por %p77, %p78
      %p80 = scmp.ne.s32.totalorder %s66, %s67
      %p81 = scmp.eq.s32.totalorder %s19, 1
      %p82 = por %p80, %p81
      %p84 = scmp.ne.s32.totalorder %s67, %s83
      %p85 = scmp.eq.s32.totalorder %s19, 0
      %p86 = por %p84, %p85
      %p87 = scmp.le.s32.totalorder 1, %s13
      %p88 = scmp.lt.s32.totalorder %s13, 3
      %p89 = pnand %p87, %p88
      %p90 = pneg %p89
      // Predicated region
      $region9: #{tpu_custom_call.1} parent=5 // pred_check
        _
      $region10: #{tpu_custom_call.1} parent=5 // pred_check_branch
        %92 = sbr.rel (%p89) target = $region12
      $region11: #{tpu_custom_call.1} parent=5 // pred_region
        %s93 = ssub.s32 %s13, 1
      $region12: #{tpu_custom_call.1} parent=5 // pred_fallthru
        _
      %p94 = scmp.lt.s32.totalorder %s13, 2
      // Predicated region
      $region13: #{tpu_custom_call.1} parent=5 // pred_check
        %p95 = pneg %p94
      $region14: #{tpu_custom_call.1} parent=5 // pred_check_branch
        %97 = sbr.rel (%p95) target = $region16
      $region15: #{tpu_custom_call.1} parent=5 // pred_region
        // Predicated region
        $region17: #{tpu_custom_call.1} parent=15 // pred_check
          %p98 = pneg %p47
        $region18: #{tpu_custom_call.1} parent=15 // pred_check_branch
          %100 = sbr.rel (%p98) target = $region20
        $region19: #{tpu_custom_call.1} parent=15 // pred_region
          %s101 = sand.u32 %s37, 1
          %s102 = scalar_lea.sflag [#allocation4], %s101
          %s103 = sand.u32 %s37, 1
          %s104 = smul.addr %s103, 4
          %s105 = scalar_lea.vmem [#allocation3], %s104
          %s107 = ssub.s32 64, 64
          %108 = vsyncadd %s102, %s107
          %s109 = sadd.s32 %s21, %s20
          %s110 = smul.addr %s109, 64
          %s111 = scalar_lea.hbm %s0, %s110
          %s113 = sshll.u32 %s105, 4
          %s114 = int_to_ptr.vmem [resolvable:$true] %s113
          %116 = dma.hbm_to_vmem [thread:$0]  %s111, 64, %s114, %s102
        $region20: #{tpu_custom_call.1} parent=15 // pred_fallthru
          _
      $region16: #{tpu_custom_call.1} parent=5 // pred_fallthru
        _
      %p117 = scmp.le.s32.totalorder 1, %s13
      %p118 = scmp.lt.s32.totalorder %s13, 3
      %p119 = pnand %p117, %p118
      %p120 = pneg %p119
      // Predicated region
      $region21: #{tpu_custom_call.1} parent=5 // pred_check
        _
      $region22: #{tpu_custom_call.1} parent=5 // pred_check_branch
        %122 = sbr.rel (%p119) target = $region24
      $region23: #{tpu_custom_call.1} parent=5 // pred_region
        %s123 = ssub.s32 %s13, 1
        %s124 = sand.u32 %s40, 1
        %s125 = scalar_lea.sflag [#allocation4], %s124
        %s126 = sand.u32 %s40, 1
        %s127 = smul.addr %s126, 4
        %s128 = scalar_lea.vmem [#allocation3], %s127
        // Predicated region
        $region25: #{tpu_custom_call.1} parent=23 // pred_check
          %p129 = pneg %p53
        $region26: #{tpu_custom_call.1} parent=23 // pred_check_branch
          %131 = sbr.rel (%p129) target = $region28
        $region27: #{tpu_custom_call.1} parent=23 // pred_region
          %132 = dma.done %s125, 64
        $region28: #{tpu_custom_call.1} parent=23 // pred_fallthru
          _
        %s133 = sand.u32 %s40, 1
        %s134 = scalar_lea.sflag [#allocation4], %s133
        %s135 = sand.u32 %s40, 1
        %s136 = smul.addr %s135, 4
        %s137 = scalar_lea.vmem [#allocation3], %s136
        %p138 = pneg %p53
        %p139 = pneg %p50
        %p140 = pneg %p79
        %p141 = pneg %p76
        %s142 = sand.u32 %s66, 1
        %s143 = scalar_lea.sflag [#allocation5], %s142
        %s144 = sand.u32 %s66, 1
        %s145 = smul.addr %s144, 2
        %s146 = scalar_lea.vmem [#allocation6], %s145
        %p147 = scmp.eq.s32.totalorder %s23, 0
        // Predicated region
        $region29: #{tpu_custom_call.1} parent=23 // pred_check
          %p148 = pneg %p147
        $region30: #{tpu_custom_call.1} parent=23 // pred_check_branch
          %150 = sbr.rel (%p148) target = $region32
        $region31: #{tpu_custom_call.1} parent=23 // pred_region
          %s151 = scalar_lea.smem [#allocation2], 0
          %152 = sst [smem:[%s151]] 0.0
          %s153 = scalar_lea.smem [#allocation2], 1
          %154 = sst [smem:[%s153]] 0.0
        $region32: #{tpu_custom_call.1} parent=23 // pred_fallthru
          _
        %v155 = vld [vmem:[%s128] sm:$0xf]
        %s156 = sld [smem:[#allocation2]]
        %vm157 = vcmask 1043456
        %v158 = vsel %vm157, %v155, 0.0
        %159 = vadd.xlane.f32.xlu0 %v158
        %v160 = vpop.xlane.xlu0 %159
        %v161 = vrot.slane %v160, 4
        %v162 = vadd.f32 %v160, %v161
        %v163 = vrot.slane %v162, 2
        %v164 = vadd.f32 %v162, %v163
        %v165 = vrot.slane %v164, 1
        %v166 = vadd.f32 %v164, %v165
        %s167 = vtos %v166
        %s168 = sadd.f32 %s156, %s167
        %s169 = scalar_lea.smem [#allocation2], 0
        %170 = sst [smem:[%s169]] %s168
        %s171 = sld [smem:[#allocation2 + $0x1]]
        %v172 = vmul.f32 %v155, %v155
        %v173 = vsel %vm157, %v172, 0.0
        %174 = vadd.xlane.f32.xlu0 %v173
        %v175 = vpop.xlane.xlu0 %174
        %v176 = vrot.slane %v175, 4
        %v177 = vadd.f32 %v175, %v176
        %v178 = vrot.slane %v177, 2
        %v179 = vadd.f32 %v177, %v178
        %v180 = vrot.slane %v179, 1
        %v181 = vadd.f32 %v179, %v180
        %s182 = vtos %v181
        %s183 = sadd.f32 %s171, %s182
        %s184 = scalar_lea.smem [#allocation2], 1
        %185 = sst [smem:[%s184]] %s183
        // Predicated region
        $region33: #{tpu_custom_call.1} parent=23 // pred_check
          %p186 = pneg %p147
        $region34: #{tpu_custom_call.1} parent=23 // pred_check_branch
          %188 = sbr.rel (%p186) target = $region36
        $region35: #{tpu_custom_call.1} parent=23 // pred_region
          %s189 = sld [smem:[#allocation2]]
          %s190 = smul.f32 %s189, 0.00390625
          %s191 = sld [smem:[#allocation2 + $0x1]]
          %s192 = smul.f32 %s191, 0.00390625
          %s193 = smul.f32 %s190, %s190
          %s194 = ssub.f32 %s192, %s193
          %s195 = sadd.f32 %s194, 1e-05
          %v196 = vstv %s195
          %v197 = vrsqrt.pop %v196
          %s198 = vtos %v197
          %v199 = vstv %s190
          %200 = vst [vmem:[%s146] sm:$0x1] %v199
          %v201 = vstv %s198
          %202 = vst [vmem:[%s146 + $0x1] sm:$0x1] %v201
        $region36: #{tpu_custom_call.1} parent=23 // pred_fallthru
          _
        %s203 = sand.u32 %s66, 1
        %s204 = scalar_lea.sflag [#allocation5], %s203
        %s205 = sand.u32 %s66, 1
        %s206 = smul.addr %s205, 2
        %s207 = scalar_lea.vmem [#allocation6], %s206
        // Predicated region
        $region37: #{tpu_custom_call.1} parent=23 // pred_check
          %p208 = pneg %p76
        $region38: #{tpu_custom_call.1} parent=23 // pred_check_branch
          %210 = sbr.rel (%p208) target = $region40
        $region39: #{tpu_custom_call.1} parent=23 // pred_region
          %s212 = ssub.s32 32, 32
          %213 = vsyncadd %s204, %s212
          %s214 = smul.addr %s22, 32
          %s215 = scalar_lea.hbm %s1, %s214
          %s217 = sshll.u32 %s207, 4
          %s218 = int_to_ptr.vmem [resolvable:$true] %s217
          %220 = dma.vmem_to_hbm [thread:$0]  %s218, 32, %s215, %s204
        $region40: #{tpu_custom_call.1} parent=23 // pred_fallthru
          _
      $region24: #{tpu_custom_call.1} parent=5 // pred_fallthru
        _
      %p221 = scmp.le.s32.totalorder 2, %s13
      // Predicated region
      $region41: #{tpu_custom_call.1} parent=5 // pred_check
        %p222 = pneg %p221
      $region42: #{tpu_custom_call.1} parent=5 // pred_check_branch
        %224 = sbr.rel (%p222) target = $region44
      $region43: #{tpu_custom_call.1} parent=5 // pred_region
        %s225 = ssub.s32 %s13, 2
        // Predicated region
        $region45: #{tpu_custom_call.1} parent=43 // pred_check
          %p226 = pneg %p82
        $region46: #{tpu_custom_call.1} parent=43 // pred_check_branch
          %228 = sbr.rel (%p226) target = $region48
        $region47: #{tpu_custom_call.1} parent=43 // pred_region
          %s229 = sand.u32 %s67, 1
          %s230 = scalar_lea.sflag [#allocation5], %s229
          %s231 = sand.u32 %s67, 1
          %s232 = smul.addr %s231, 2
          %s233 = scalar_lea.vmem [#allocation6], %s232
          %234 = dma.done %s230, 32
        $region48: #{tpu_custom_call.1} parent=43 // pred_fallthru
          _
      $region44: #{tpu_custom_call.1} parent=5 // pred_fallthru
        _
    $region6: #{tpu_custom_call.1} parent=1 // loop_footer
      %s17 = sadd.s32 1, %s13
    $region7: #{tpu_custom_call.1} parent=1 // loop_footer_branch
      %12 = sbr.rel target = $region3
    $region8: #{tpu_custom_call.1} parent=1 // loop_exit
      _
    %235 = vsyncpa [#allocation4], 1
    %s236 = scalar_lea.sflag [#allocation4], 1
    %237 = vsyncpa %s236, 1
    %238 = vsyncpa [#allocation5], 1
    %s239 = scalar_lea.sflag [#allocation5], 1
    %240 = vsyncpa %s239, 1

</llo_original>
